<compile_context>
chip_gen: v7x
topology: tpu7x:2x2x1
jax: 0.10.0
libtpu: 0.0.40
codegen_flags: <defaults>
</compile_context>

<pallas_src>
import jax
import jax.numpy as jnp
from jax.experimental import pallas as pl
from jax.experimental.pallas import tpu as pltpu


# Rows of 128 lanes processed per grid step.
# 2048 * 128 * 4 B = 1 MiB per input block; 2 inputs x 2 pipeline buffers
# = 4 MiB VMEM, safe on v5e/v6e (32 MiB scoped) and v7x (32 MiB scoped / 64 MiB phys).
_TILE_ROWS = 2048
_PAD_NEG = -1e30  # softplus(_PAD_NEG - 0) == 0 exactly in the stable form


def _binary_loss_kernel(a_ref, b_ref, out_ref):
    # a/b tiles: (block_rows, 128), lane- and sublane-dense.
    d = a_ref[...].astype(jnp.float32) - b_ref[...].astype(jnp.float32)
    # Numerically stable softplus: max(d, 0) + log(1 + exp(-|d|))
    # (single EUP exp + log per element; no per-row max/sum, no column gather).
    sp = jnp.maximum(d, 0.0) + jnp.log(1.0 + jnp.exp(-jnp.abs(d)))
    tile_sum = jnp.sum(sp)

    @pl.when(pl.program_id(0) == 0)
    def _():
        out_ref[0, 0] = jnp.float32(0.0)

    out_ref[0, 0] += tile_sum


def binary_loss(pos_score, neg_score):
    """pos_score: (Np, 2), neg_score: (Nn, 2) -> scalar float32 loss."""
    n_pos = pos_score.shape[0]
    n_neg = neg_score.shape[0]
    n_tot = n_pos + n_neg
    if n_tot == 0:
        return jnp.float32(0.0)

    # d = a - b per sample:
    #   pos rows: softplus(x0 - x1)  -> a = x[:, 0], b = x[:, 1]
    #   neg rows: softplus(x1 - x0)  -> a = x[:, 1], b = x[:, 0]
    a = jnp.concatenate([pos_score[:, 0], neg_score[:, 1]])  # (Ntot,)
    b = jnp.concatenate([pos_score[:, 1], neg_score[:, 0]])  # (Ntot,)

    # Pad so the flat vector reshapes to (rows, 128) with rows a multiple of
    # block_rows -> every grid block is full (no masking needed).
    rows = -(-n_tot // 128)          # ceil
    rows = -(-rows // 8) * 8         # sublane multiple of 8
    block_rows = min(_TILE_ROWS, rows)
    rows = -(-rows // block_rows) * block_rows
    n_pad = rows * 128 - n_tot

    a = jnp.pad(a, (0, n_pad), constant_values=_PAD_NEG).reshape(rows, 128)
    b = jnp.pad(b, (0, n_pad), constant_values=0).reshape(rows, 128)

    grid = (rows // block_rows,)
    # NOTE: on v7x a leading 2-wide "parallel" axis (one partial sum per
    # TensorCore, added in the wrapper) would use both TCs for very large N;
    # omitted here since it only pays off at N >> 10^5.
    out = pl.pallas_call(
        _binary_loss_kernel,
        out_shape=jax.ShapeDtypeStruct((1, 1), jnp.float32),
        grid=grid,
        in_specs=[
            pl.BlockSpec((block_rows, 128), lambda i: (i, 0)),
            pl.BlockSpec((block_rows, 128), lambda i: (i, 0)),
        ],
        out_specs=pl.BlockSpec(memory_space=pltpu.MemorySpace.SMEM),
        compiler_params=pltpu.CompilerParams(
            dimension_semantics=("arbitrary",)),
    )(a, b)
    return out[0, 0]


def _reference(pos_score, neg_score):
    pos_ls = jax.nn.log_softmax(pos_score.astype(jnp.float32), axis=1)
    neg_ls = jax.nn.log_softmax(neg_score.astype(jnp.float32), axis=1)
    return jnp.sum(-pos_ls[:, 1]) + jnp.sum(-neg_ls[:, 0])


if __name__ == "__main__":
    key = jax.random.PRNGKey(0)
    k1, k2 = jax.random.split(key)

    # Small shapes consistent with the module: (num_samples, 2) class scores.
    pos_score = jax.random.normal(k1, (8, 2), dtype=jnp.float32)
    neg_score = jax.random.normal(k2, (16, 2), dtype=jnp.float32)

    loss = binary_loss(pos_score, neg_score)
    jax.block_until_ready(loss)

    ref = _reference(pos_score, neg_score)
    assert jnp.allclose(loss, ref, rtol=1e-5, atol=1e-5), (loss, ref)

    print("KERNEL_OK")
</pallas_src>

<mosaic_0001>
module attributes {stable_mosaic.version = 11 : i64} {
  func.func @_binary_loss_kernel(%arg0: i32, %arg1: memref<8x128xf32, #tpu.memory_space<vmem>>, %arg2: memref<8x128xf32, #tpu.memory_space<vmem>>, %arg3: memref<1x1xf32, #tpu.memory_space<smem>>) attributes {dimension_semantics = [#tpu.dimension_semantics<arbitrary>], iteration_bounds = array<i64: 1>, scalar_prefetch = 0 : i64, scratch_operands = 0 : i64, tpu.core_type = #tpu.core_type<tc>, window_params = [{transform_indices = @transform_0, window_bounds = array<i64: 8, 128>}, {transform_indices = @transform_1, window_bounds = array<i64: 8, 128>}, {transform_indices = @transform_2, window_bounds = array<i64: 1, 1>}]} {
    %c0 = arith.constant 0 : index
    %c0_0 = arith.constant 0 : index
    %0 = vector.load %arg1[%c0, %c0_0] : memref<8x128xf32, #tpu.memory_space<vmem>>, vector<8x128xf32>
    %c0_1 = arith.constant 0 : index
    %c0_2 = arith.constant 0 : index
    %1 = vector.load %arg2[%c0_1, %c0_2] : memref<8x128xf32, #tpu.memory_space<vmem>>, vector<8x128xf32>
    %2 = arith.subf %0, %1 : vector<8x128xf32>
    %cst = arith.constant 0.000000e+00 : f32
    %3 = vector.broadcast %cst : f32 to vector<8x128xf32>
    %4 = arith.maximumf %2, %3 : vector<8x128xf32>
    %5 = math.absf %2 : vector<8x128xf32>
    %cst_3 = arith.constant 0.000000e+00 : f32
    %6 = vector.broadcast %cst_3 : f32 to vector<8x128xf32>
    %7 = arith.subf %6, %5 : vector<8x128xf32>
    %8 = math.exp %7 : vector<8x128xf32>
    %cst_4 = arith.constant 1.000000e+00 : f32
    %9 = vector.broadcast %cst_4 : f32 to vector<8x128xf32>
    %10 = arith.addf %9, %8 : vector<8x128xf32>
    %11 = math.log %10 : vector<8x128xf32>
    %12 = arith.addf %4, %11 : vector<8x128xf32>
    %13 = vector.shape_cast %12 : vector<8x128xf32> to vector<1x8x128xf32>
    %cst_5 = arith.constant dense<0.000000e+00> : vector<1xf32>
    %14 = vector.multi_reduction <add>, %13, %cst_5 [1, 2] : vector<1x8x128xf32> to vector<1xf32>
    %15 = vector.shape_cast %14 : vector<1xf32> to vector<1x1x1xf32>
    %16 = vector.extract %15[0, 0, 0] : f32 from vector<1x1x1xf32>
    %c0_i32 = arith.constant 0 : i32
    %17 = arith.cmpi eq, %arg0, %c0_i32 : i32
    %18 = arith.extui %17 : i1 to i32
    %c0_i32_6 = arith.constant 0 : i32
    %19 = arith.cmpi ne, %18, %c0_i32_6 : i32
    scf.if %19 {
      %cst_11 = arith.constant 0.000000e+00 : f32
      %c0_12 = arith.constant 0 : index
      %c0_13 = arith.constant 0 : index
      %23 = memref.load %arg3[%c0_12, %c0_13] : memref<1x1xf32, #tpu.memory_space<smem>>
      memref.store %cst_11, %arg3[%c0_12, %c0_13] : memref<1x1xf32, #tpu.memory_space<smem>>
    } else {
    }
    %c0_7 = arith.constant 0 : index
    %c0_8 = arith.constant 0 : index
    %20 = memref.load %arg3[%c0_7, %c0_8] : memref<1x1xf32, #tpu.memory_space<smem>>
    %21 = arith.addf %20, %16 : f32
    %c0_9 = arith.constant 0 : index
    %c0_10 = arith.constant 0 : index
    %22 = memref.load %arg3[%c0_9, %c0_10] : memref<1x1xf32, #tpu.memory_space<smem>>
    memref.store %21, %arg3[%c0_9, %c0_10] : memref<1x1xf32, #tpu.memory_space<smem>>
    return
  }
  func.func @transform_0(%arg0: i32) -> (i32, i32) {
    %c0_i32 = arith.constant 0 : i32
    %c0_i32_0 = arith.constant 0 : i32
    return %arg0, %c0_i32 : i32, i32
  }
  func.func @transform_1(%arg0: i32) -> (i32, i32) {
    %c0_i32 = arith.constant 0 : i32
    %c0_i32_0 = arith.constant 0 : i32
    return %arg0, %c0_i32 : i32, i32
  }
  func.func @transform_2(%arg0: i32) -> (i32, i32) {
    %c0_i32 = arith.constant 0 : i32
    %c0_i32_0 = arith.constant 0 : i32
    %c0_i32_1 = arith.constant 0 : i32
    return %c0_i32, %c0_i32_0 : i32, i32
  }
}

</mosaic_0001>

<llo_original>
// kernel: tpu_custom_call.1
$region0: #{tpu_custom_call.1}
  #allocation0 [shape = 'u32[]', space=smem, size = 0x4, offset = 0x4, fixed_abs, tag = 'smem constant byte address 0x4 - core index']
  #allocation1 [shape = 'u32[144,128]{1,0:T(1,128)}', space=vmem, size = 0x12000, scoped, tag = 'internal scratch']
  %s0 = inlined_call_operand.hbm [shape: f32[8,128], index: 0, kind: input, shape index: {}]
  %s1 = inlined_call_operand.hbm [shape: f32[8,128], index: 1, kind: input, shape index: {}]
  %s2 = inlined_call_operand.hbm [shape: f32[1,1], index: 2, kind: output, shape index: {}]
  %s3 = sld [smem:[#allocation0]]
  $region30: #{tpu_custom_call.1} parent=0
    _
  %s5 = ssub.s32 1, %s3
  %s6 = scalar_select 0, %s5, %s3
  $region1: #{tpu_custom_call.1} parent=0
    #allocation2 [shape = 'u8[4096]{0}', space=vmem, size = 0x1000, scoped, tag = 'input window, operand 0, single buffered']
    #allocation3 [shape = 's32[1]{0}', space=sflag, size = 0x4, scoped, tag = 'scoped memory for tpu_custom_call.1']
    #allocation4 [shape = 's32[1]{0}', space=sflag, size = 0x4, scoped, tag = 'scoped memory for tpu_custom_call.1']
    #allocation5 [shape = 'u8[4096]{0}', space=vmem, size = 0x1000, scoped, tag = 'input window, operand 1, single buffered']
    #allocation6 [shape = 's32[1]{0}', space=sflag, size = 0x4, scoped, tag = 'scoped memory for tpu_custom_call.1']
    #allocation7 [shape = 'u8[512]{0}', space=smem, size = 0x200, scoped, tag = 'output window, operand 0, single buffered']
    %7 = vsyncpa [#allocation3], 0
    %8 = vsyncpa [#allocation6], 0
    %9 = vsyncpa [#allocation4], 0
    // Predicated region
    $region2: #{tpu_custom_call.1} parent=1 // pred_check
      _
    $region3: #{tpu_custom_call.1} parent=1 // pred_check_branch
      %11 = sbr.rel (0) target = $region5
    $region4: #{tpu_custom_call.1} parent=1 // pred_region
      %s13 = ssub.s32 128, 128
      %14 = vsyncadd [#allocation3], %s13
      %s16 = sshll.u32 [#allocation2], 4
      %s17 = int_to_ptr.vmem [resolvable:$true] %s16
      %19 = dma.hbm_to_vmem [thread:$0]  %s0, 128, %s17, [#allocation3]
    $region5: #{tpu_custom_call.1} parent=1 // pred_fallthru
      _
    // Predicated region
    $region6: #{tpu_custom_call.1} parent=1 // pred_check
      _
    $region7: #{tpu_custom_call.1} parent=1 // pred_check_branch
      %21 = sbr.rel (0) target = $region9
    $region8: #{tpu_custom_call.1} parent=1 // pred_region
      %s23 = ssub.s32 128, 128
      %24 = vsyncadd [#allocation6], %s23
      %s26 = sshll.u32 [#allocation5], 4
      %s27 = int_to_ptr.vmem [resolvable:$true] %s26
      %29 = dma.hbm_to_vmem [thread:$0]  %s1, 128, %s27, [#allocation6]
    $region9: #{tpu_custom_call.1} parent=1 // pred_fallthru
      _
    // Predicated region
    $region10: #{tpu_custom_call.1} parent=1 // pred_check
      _
    $region11: #{tpu_custom_call.1} parent=1 // pred_check_branch
      %31 = sbr.rel (0) target = $region13
    $region12: #{tpu_custom_call.1} parent=1 // pred_region
      %32 = dma.done [#allocation3], 128
    $region13: #{tpu_custom_call.1} parent=1 // pred_fallthru
      _
    // Predicated region
    $region14: #{tpu_custom_call.1} parent=1 // pred_check
      _
    $region15: #{tpu_custom_call.1} parent=1 // pred_check_branch
      %34 = sbr.rel (0) target = $region17
    $region16: #{tpu_custom_call.1} parent=1 // pred_region
      %35 = dma.done [#allocation6], 128
    $region17: #{tpu_custom_call.1} parent=1 // pred_fallthru
      _
    %v36 = vld [vmem:[#allocation2] sm:$0xff]
    %v37 = vld [vmem:[#allocation5] sm:$0xff]
    %v38 = vsub.f32 %v36, %v37
    %v39 = vmax.f32 %v38, 0.0
    %v40 = vand.u32 2147483647, %v38
    %v41 = vsub.f32 0.0, %v40
    %v42 = vmul.f32 %v41, 1.442695
    %v43 = vpow.pop %v42
    %v44 = vadd.f32 %v43, 1.0
    %v45 = vlog2.pop %v44
    %v46 = vmul.f32 %v45, 0.6931472
    %v47 = vadd.f32 %v39, %v46
    %48 = vadd.xlane.f32.xlu0 %v47
    %v49 = vpop.xlane.xlu0 %48
    %v50 = vrot.slane %v49, 4
    %v51 = vadd.f32 %v49, %v50
    %v52 = vrot.slane %v51, 2
    %v53 = vadd.f32 %v51, %v52
    %v54 = vrot.slane %v53, 1
    %v55 = vadd.f32 %v53, %v54
    %s56 = vtos %v55
    %p57 = scmp.eq.s32.totalorder 0, 0
    // Predicated region
    $region18: #{tpu_custom_call.1} parent=1 // pred_check
      %p58 = pneg %p57
    $region19: #{tpu_custom_call.1} parent=1 // pred_check_branch
      %60 = sbr.rel (%p58) target = $region21
    $region20: #{tpu_custom_call.1} parent=1 // pred_region
      %s61 = scalar_lea.smem [#allocation7], 0
      %62 = sst [smem:[%s61]] 0.0
    $region21: #{tpu_custom_call.1} parent=1 // pred_fallthru
      _
    %s63 = sld [smem:[#allocation7]]
    %s64 = sadd.f32 %s63, %s56
    %s65 = scalar_lea.smem [#allocation7], 0
    %66 = sst [smem:[%s65]] %s64
    // Predicated region
    $region22: #{tpu_custom_call.1} parent=1 // pred_check
      _
    $region23: #{tpu_custom_call.1} parent=1 // pred_check_branch
      %68 = sbr.rel (0) target = $region25
    $region24: #{tpu_custom_call.1} parent=1 // pred_region
      %s70 = ssub.s32 16, 16
      %71 = vsyncadd [#allocation4], %s70
      %74 = dma.smem_to_hbm [#allocation7], 16, %s2, [#allocation4]
    $region25: #{tpu_custom_call.1} parent=1 // pred_fallthru
      _
    // Predicated region
    $region26: #{tpu_custom_call.1} parent=1 // pred_check
      _
    $region27: #{tpu_custom_call.1} parent=1 // pred_check_branch
      %76 = sbr.rel (0) target = $region29
    $region28: #{tpu_custom_call.1} parent=1 // pred_region
      %77 = dma.done [#allocation4], 16
    $region29: #{tpu_custom_call.1} parent=1 // pred_fallthru
      _
    %78 = sfence
    %79 = vsyncpa [#allocation3], 1
    %80 = vsyncpa [#allocation6], 1
    %81 = vsyncpa [#allocation4], 1

</llo_original>
